<compile_context>
chip_gen: v7x
topology: tpu7x:2x2x1
jax: 0.10.0
libtpu: 0.0.40
codegen_flags: <defaults>
</compile_context>

<pallas_src>
import jax
import jax.numpy as jnp
from jax import lax
from jax.experimental import pallas as pl
from jax.experimental.pallas import tpu as pltpu

_INV_SQRT2 = 0.7071067811865476
_LN_EPS = 1e-5


def _round_up(x, m):
    return ((x + m - 1) // m) * m


def _head_kernel(feat_ref, w1_ref, b1_ref, gamma_ref, beta_ref,
                 w2_ref, b2_ref, out_ref):
    # feat_ref: [TB, 2E] bf16 (one batch tile), weights VMEM-resident.
    feat = feat_ref[...]

    # Single K=2E matmul against the full W1 (bf16 MXU, f32 accumulate).
    h = jnp.dot(feat, w1_ref[...], preferred_element_type=jnp.float32)
    h = h + b1_ref[...]                                   # f32 [TB, 2E]

    # exact GELU (erf form), same as torch.nn.GELU() default, in f32
    h = 0.5 * h * (1.0 + lax.erf(h * _INV_SQRT2))

    # LayerNorm over last dim (true 2E width), biased variance, eps=1e-5
    mean = jnp.mean(h, axis=-1, keepdims=True)
    centered = h - mean
    var = jnp.mean(centered * centered, axis=-1, keepdims=True)
    hn = centered * lax.rsqrt(var + _LN_EPS)
    hn = hn * gamma_ref[...] + beta_ref[...]

    # final Linear(2E -> num_labels), lane-dense padded output columns
    out_ref[...] = (jnp.dot(hn.astype(w2_ref.dtype), w2_ref[...],
                            preferred_element_type=jnp.float32)
                    + b2_ref[...])


def logits_proj_pallas(img_feat, txt_feat, head_params, *, block_b=256):
    """Pallas implementation of self.logits_proj(cat([img, txt], -1))."""
    w1, b1, gamma, beta, w2, b2 = head_params   # w1: [2E, 2E] (in, out) layout
    B, E = img_feat.shape
    E2 = 2 * E
    num_labels = w2.shape[1]

    # concat once in XLA (cheap contiguous copy) -> single K=2E MXU pass
    feat = jnp.concatenate([img_feat, txt_feat], axis=-1)          # [B, 2E]

    # lane-dense output: pad num_labels up to a multiple of 128 with zeros
    lp = _round_up(num_labels, 128)
    w2p = jnp.zeros((E2, lp), w2.dtype).at[:, :num_labels].set(w2)
    b2p = jnp.zeros((lp,), b2.dtype).at[:num_labels].set(b2)

    # sublane-aligned batch tile (bf16 rows pack 16/sublane-pair)
    tb = min(block_b, _round_up(B, 16))
    bp = _round_up(B, tb)
    nb = bp // tb
    feat = jnp.pad(feat, ((0, bp - B), (0, 0)))

    # bf16 MXU inputs; biases / LN params stay f32
    feat = feat.astype(jnp.bfloat16)
    w1b = w1.astype(jnp.bfloat16)
    w2b = w2p.astype(jnp.bfloat16)

    # VMEM budget: resident weights + double-buffered activation tiles,
    # clamped so it stays safe on v7x's 64 MiB part.
    weight_bytes = E2 * E2 * 2 + E2 * lp * 2
    bias_bytes = (3 * E2 + lp) * 4
    act_bytes = 2 * (tb * E2 * 2) + 2 * (tb * lp * 4)
    vmem_limit = int(min(max(4 * (weight_bytes + bias_bytes + act_bytes),
                             8 << 20), 48 << 20))

    out = pl.pallas_call(
        _head_kernel,
        out_shape=jax.ShapeDtypeStruct((bp, lp), jnp.float32),
        grid=(nb,),
        in_specs=[
            pl.BlockSpec((tb, E2), lambda i: (i, 0)),    # feat tile (pipelined)
            pl.BlockSpec((E2, E2), lambda i: (0, 0)),    # W1  (VMEM-resident)
            pl.BlockSpec((1, E2), lambda i: (0, 0)),     # b1
            pl.BlockSpec((1, E2), lambda i: (0, 0)),     # gamma
            pl.BlockSpec((1, E2), lambda i: (0, 0)),     # beta
            pl.BlockSpec((E2, lp), lambda i: (0, 0)),    # W2 (padded cols)
            pl.BlockSpec((1, lp), lambda i: (0, 0)),     # b2 (padded cols)
        ],
        out_specs=pl.BlockSpec((tb, lp), lambda i: (i, 0)),
        compiler_params=pltpu.CompilerParams(
            dimension_semantics=("parallel",),
            vmem_limit_bytes=vmem_limit),
        cost_estimate=pl.CostEstimate(
            flops=2 * bp * E2 * E2 + 2 * bp * E2 * lp + 12 * bp * E2,
            transcendentals=bp * E2,
            bytes_accessed=(bp * E2 * 2 + E2 * E2 * 2 + E2 * lp * 2
                            + (3 * E2 + lp) * 4 + bp * lp * 4)),
    )(feat, w1b,
      b1.reshape(1, -1).astype(jnp.float32),
      gamma.reshape(1, -1).astype(jnp.float32),
      beta.reshape(1, -1).astype(jnp.float32),
      w2b, b2p.reshape(1, -1).astype(jnp.float32))

    # strip batch + label padding
    return out[:B, :num_labels]


# ---------------- synthetic encoder + parameter setup (plain-JAX glue) -------

def init_params(key, *, C, H, W, vocab, tok_dim, embed_dim, num_labels):
    ks = jax.random.split(key, 10)
    chw = C * H * W
    E2 = 2 * embed_dim
    params = {
        # synthetic "encoder"
        "w_img": jax.random.normal(ks[0], (chw, embed_dim), jnp.float32) * 0.02,
        "b_img": jax.random.normal(ks[1], (embed_dim,), jnp.float32) * 0.02,
        "tok_emb": jax.random.normal(ks[2], (vocab, tok_dim), jnp.float32) * 0.02,
        "w_txt": jax.random.normal(ks[3], (tok_dim, embed_dim), jnp.float32) * 0.02,
        "b_txt": jax.random.normal(ks[4], (embed_dim,), jnp.float32) * 0.02,
        # logits_proj head (weights stored (in, out) so kernel does x @ W)
        "w1": jax.random.normal(ks[5], (E2, E2), jnp.float32) * 0.02,
        "b1": jax.random.normal(ks[6], (E2,), jnp.float32) * 0.02,
        "gamma": jnp.ones((E2,), jnp.float32),
        "beta": jnp.zeros((E2,), jnp.float32),
        "w2": jax.random.normal(ks[7], (E2, num_labels), jnp.float32) * 0.02,
        "b2": jax.random.normal(ks[8], (num_labels,), jnp.float32) * 0.02,
    }
    return params


def encode_image(image_nchw, params):
    # image: [B, C, H, W] NCHW -> flatten -> linear projection to embed_dim
    B = image_nchw.shape[0]
    flat = image_nchw.reshape(B, -1)
    return flat @ params["w_img"] + params["b_img"]


def encode_text(text_ids, params):
    # text: [B, L] int32 token ids -> embedding lookup -> mean pool -> linear
    emb = jnp.take(params["tok_emb"], text_ids, axis=0)   # [B, L, tok_dim]
    pooled = jnp.mean(emb, axis=1)                        # [B, tok_dim]
    return pooled @ params["w_txt"] + params["b_txt"]


def clip_multimodal_classifier(image, text, params):
    txt_feat = encode_text(text, params)
    img_feat = encode_image(image, params)
    head_params = (params["w1"], params["b1"], params["gamma"],
                   params["beta"], params["w2"], params["b2"])
    return logits_proj_pallas(img_feat, txt_feat, head_params)


if __name__ == "__main__":
    B, C, H, W = 2, 4, 16, 16
    L, VOCAB, TOK_DIM = 8, 50, 32
    EMBED_DIM, NUM_LABELS = 32, 2

    key = jax.random.PRNGKey(0)
    k_img, k_txt, k_par = jax.random.split(key, 3)

    image = jax.random.normal(k_img, (B, C, H, W), jnp.float32)
    text = jax.random.randint(k_txt, (B, L), 0, VOCAB, dtype=jnp.int32)
    params = init_params(k_par, C=C, H=H, W=W, vocab=VOCAB, tok_dim=TOK_DIM,
                         embed_dim=EMBED_DIM, num_labels=NUM_LABELS)

    logits = clip_multimodal_classifier(image, text, params)
    jax.block_until_ready(logits)
    assert logits.shape == (B, NUM_LABELS)
    assert bool(jnp.all(jnp.isfinite(logits)))
    print("KERNEL_OK")
</pallas_src>

<mosaic_0001>
module attributes {stable_mosaic.version = 11 : i64} {
  func.func @_head_kernel(%arg0: i32, %arg1: memref<16x64xbf16, #tpu.memory_space<vmem>>, %arg2: memref<64x64xbf16, #tpu.memory_space<vmem>>, %arg3: memref<1x64xf32, #tpu.memory_space<vmem>>, %arg4: memref<1x64xf32, #tpu.memory_space<vmem>>, %arg5: memref<1x64xf32, #tpu.memory_space<vmem>>, %arg6: memref<64x128xbf16, #tpu.memory_space<vmem>>, %arg7: memref<1x128xf32, #tpu.memory_space<vmem>>, %arg8: memref<16x128xf32, #tpu.memory_space<vmem>>) attributes {dimension_semantics = [#tpu.dimension_semantics<parallel>], iteration_bounds = array<i64: 1>, scalar_prefetch = 0 : i64, scratch_operands = 0 : i64, tpu.core_type = #tpu.core_type<tc>, window_params = [{transform_indices = @transform_0, window_bounds = array<i64: 16, 64>}, {pipeline_mode = #tpu.pipeline_mode<synchronous>, transform_indices = @transform_1, window_bounds = array<i64: 64, 64>}, {pipeline_mode = #tpu.pipeline_mode<synchronous>, transform_indices = @transform_2, window_bounds = array<i64: 1, 64>}, {pipeline_mode = #tpu.pipeline_mode<synchronous>, transform_indices = @transform_3, window_bounds = array<i64: 1, 64>}, {pipeline_mode = #tpu.pipeline_mode<synchronous>, transform_indices = @transform_4, window_bounds = array<i64: 1, 64>}, {pipeline_mode = #tpu.pipeline_mode<synchronous>, transform_indices = @transform_5, window_bounds = array<i64: 64, 128>}, {pipeline_mode = #tpu.pipeline_mode<synchronous>, transform_indices = @transform_6, window_bounds = array<i64: 1, 128>}, {transform_indices = @transform_7, window_bounds = array<i64: 16, 128>}]} {
    %c0 = arith.constant 0 : index
    %c0_0 = arith.constant 0 : index
    %0 = vector.load %arg1[%c0, %c0_0] : memref<16x64xbf16, #tpu.memory_space<vmem>>, vector<16x64xbf16>
    %c0_1 = arith.constant 0 : index
    %c0_2 = arith.constant 0 : index
    %1 = vector.load %arg2[%c0_1, %c0_2] : memref<64x64xbf16, #tpu.memory_space<vmem>>, vector<64x64xbf16>
    %cst = arith.constant dense<0.000000e+00> : vector<16x64xf32>
    %2 = tpu.matmul %0, %1, %cst {dimension_numbers = #tpu.dot_dimension_numbers<[1], [0], [0], [1], [0, 0, 1, 1], [], []>} : vector<16x64xbf16>, vector<64x64xbf16>, vector<16x64xf32> -> vector<16x64xf32>
    %c0_3 = arith.constant 0 : index
    %c0_4 = arith.constant 0 : index
    %3 = vector.load %arg3[%c0_3, %c0_4] : memref<1x64xf32, #tpu.memory_space<vmem>>, vector<1x64xf32>
    %4 = vector.broadcast %3 : vector<1x64xf32> to vector<16x64xf32>
    %5 = arith.addf %2, %4 : vector<16x64xf32>
    %cst_5 = arith.constant 5.000000e-01 : f32
    %6 = vector.broadcast %cst_5 : f32 to vector<16x64xf32>
    %7 = arith.mulf %6, %5 : vector<16x64xf32>
    %cst_6 = arith.constant 0.707106769 : f32
    %8 = vector.broadcast %cst_6 : f32 to vector<16x64xf32>
    %9 = arith.mulf %5, %8 : vector<16x64xf32>
    %10 = math.erf %9 : vector<16x64xf32>
    %cst_7 = arith.constant 1.000000e+00 : f32
    %11 = vector.broadcast %cst_7 : f32 to vector<16x64xf32>
    %12 = arith.addf %11, %10 : vector<16x64xf32>
    %13 = arith.mulf %7, %12 : vector<16x64xf32>
    %cst_8 = arith.constant dense<0.000000e+00> : vector<16xf32>
    %14 = vector.multi_reduction <add>, %13, %cst_8 [1] : vector<16x64xf32> to vector<16xf32>
    %15 = vector.shape_cast %14 : vector<16xf32> to vector<16x1xf32>
    %cst_9 = arith.constant 6.400000e+01 : f32
    %16 = vector.broadcast %cst_9 : f32 to vector<16x1xf32>
    %17 = arith.divf %15, %16 : vector<16x1xf32>
    %18 = vector.broadcast %17 : vector<16x1xf32> to vector<16x64xf32>
    %19 = arith.subf %13, %18 : vector<16x64xf32>
    %20 = arith.mulf %19, %19 : vector<16x64xf32>
    %cst_10 = arith.constant dense<0.000000e+00> : vector<16xf32>
    %21 = vector.multi_reduction <add>, %20, %cst_10 [1] : vector<16x64xf32> to vector<16xf32>
    %22 = vector.shape_cast %21 : vector<16xf32> to vector<16x1xf32>
    %cst_11 = arith.constant 6.400000e+01 : f32
    %23 = vector.broadcast %cst_11 : f32 to vector<16x1xf32>
    %24 = arith.divf %22, %23 : vector<16x1xf32>
    %cst_12 = arith.constant 9.99999974E-6 : f32
    %25 = vector.broadcast %cst_12 : f32 to vector<16x1xf32>
    %26 = arith.addf %24, %25 : vector<16x1xf32>
    %27 = math.rsqrt %26 : vector<16x1xf32>
    %28 = vector.broadcast %27 : vector<16x1xf32> to vector<16x64xf32>
    %29 = arith.mulf %19, %28 : vector<16x64xf32>
    %c0_13 = arith.constant 0 : index
    %c0_14 = arith.constant 0 : index
    %30 = vector.load %arg4[%c0_13, %c0_14] : memref<1x64xf32, #tpu.memory_space<vmem>>, vector<1x64xf32>
    %31 = vector.broadcast %30 : vector<1x64xf32> to vector<16x64xf32>
    %32 = arith.mulf %29, %31 : vector<16x64xf32>
    %c0_15 = arith.constant 0 : index
    %c0_16 = arith.constant 0 : index
    %33 = vector.load %arg5[%c0_15, %c0_16] : memref<1x64xf32, #tpu.memory_space<vmem>>, vector<1x64xf32>
    %34 = vector.broadcast %33 : vector<1x64xf32> to vector<16x64xf32>
    %35 = arith.addf %32, %34 : vector<16x64xf32>
    %36 = arith.truncf %35 : vector<16x64xf32> to vector<16x64xbf16>
    %c0_17 = arith.constant 0 : index
    %c0_18 = arith.constant 0 : index
    %37 = vector.load %arg6[%c0_17, %c0_18] : memref<64x128xbf16, #tpu.memory_space<vmem>>, vector<64x128xbf16>
    %cst_19 = arith.constant dense<0.000000e+00> : vector<16x128xf32>
    %38 = tpu.matmul %36, %37, %cst_19 {dimension_numbers = #tpu.dot_dimension_numbers<[1], [0], [0], [1], [0, 0, 1, 1], [], []>} : vector<16x64xbf16>, vector<64x128xbf16>, vector<16x128xf32> -> vector<16x128xf32>
    %c0_20 = arith.constant 0 : index
    %c0_21 = arith.constant 0 : index
    %39 = vector.load %arg7[%c0_20, %c0_21] : memref<1x128xf32, #tpu.memory_space<vmem>>, vector<1x128xf32>
    %40 = vector.broadcast %39 : vector<1x128xf32> to vector<16x128xf32>
    %41 = arith.addf %38, %40 : vector<16x128xf32>
    %c0_22 = arith.constant 0 : index
    %c0_23 = arith.constant 0 : index
    %42 = vector.load %arg8[%c0_22, %c0_23] : memref<16x128xf32, #tpu.memory_space<vmem>>, vector<16x128xf32>
    tpu.vector_store %arg8[%c0_22, %c0_23], %41 {strides = array<i32>} : memref<16x128xf32, #tpu.memory_space<vmem>>, vector<16x128xf32>,
    return
  }
  func.func @transform_0(%arg0: i32) -> (i32, i32) {
    %c0_i32 = arith.constant 0 : i32
    %c0_i32_0 = arith.constant 0 : i32
    return %arg0, %c0_i32 : i32, i32
  }
  func.func @transform_1(%arg0: i32) -> (i32, i32) {
    %c0_i32 = arith.constant 0 : i32
    %c0_i32_0 = arith.constant 0 : i32
    %c0_i32_1 = arith.constant 0 : i32
    return %c0_i32, %c0_i32_0 : i32, i32
  }
  func.func @transform_2(%arg0: i32) -> (i32, i32) {
    %c0_i32 = arith.constant 0 : i32
    %c0_i32_0 = arith.constant 0 : i32
    %c0_i32_1 = arith.constant 0 : i32
    return %c0_i32, %c0_i32_0 : i32, i32
  }
  func.func @transform_3(%arg0: i32) -> (i32, i32) {
    %c0_i32 = arith.constant 0 : i32
    %c0_i32_0 = arith.constant 0 : i32
    %c0_i32_1 = arith.constant 0 : i32
    return %c0_i32, %c0_i32_0 : i32, i32
  }
  func.func @transform_4(%arg0: i32) -> (i32, i32) {
    %c0_i32 = arith.constant 0 : i32
    %c0_i32_0 = arith.constant 0 : i32
    %c0_i32_1 = arith.constant 0 : i32
    return %c0_i32, %c0_i32_0 : i32, i32
  }
  func.func @transform_5(%arg0: i32) -> (i32, i32) {
    %c0_i32 = arith.constant 0 : i32
    %c0_i32_0 = arith.constant 0 : i32
    %c0_i32_1 = arith.constant 0 : i32
    return %c0_i32, %c0_i32_0 : i32, i32
  }
  func.func @transform_6(%arg0: i32) -> (i32, i32) {
    %c0_i32 = arith.constant 0 : i32
    %c0_i32_0 = arith.constant 0 : i32
    %c0_i32_1 = arith.constant 0 : i32
    return %c0_i32, %c0_i32_0 : i32, i32
  }
  func.func @transform_7(%arg0: i32) -> (i32, i32) {
    %c0_i32 = arith.constant 0 : i32
    %c0_i32_0 = arith.constant 0 : i32
    return %arg0, %c0_i32 : i32, i32
  }
}

</mosaic_0001>

<llo_original>
// kernel: tpu_custom_call.1
$region0: #{tpu_custom_call.1}
  #allocation0 [shape = 'u32[]', space=smem, size = 0x4, offset = 0x4, fixed_abs, tag = 'smem constant byte address 0x4 - core index']
  #allocation1 [shape = 'u32[144,128]{1,0:T(1,128)}', space=vmem, size = 0x12000, scoped, tag = 'internal scratch']
  %s0 = inlined_call_operand.hbm [shape: bf16[16,64], index: 0, kind: input, shape index: {}]
  %s1 = inlined_call_operand.hbm [shape: bf16[64,64], index: 1, kind: input, shape index: {}]
  %s2 = inlined_call_operand.vmem [shape: f32[1,64], index: 2, kind: input, shape index: {}]
  %s3 = inlined_call_operand.vmem [shape: f32[1,64], index: 3, kind: input, shape index: {}]
  %s4 = inlined_call_operand.vmem [shape: f32[1,64], index: 4, kind: input, shape index: {}]
  %s5 = inlined_call_operand.hbm [shape: bf16[64,128], index: 5, kind: input, shape index: {}]
  %s6 = inlined_call_operand.vmem [shape: f32[1,128], index: 6, kind: input, shape index: {}]
  %s7 = inlined_call_operand.hbm [shape: f32[16,128], index: 7, kind: output, shape index: {}]
  %s8 = sld [smem:[#allocation0]]
  $region50: #{tpu_custom_call.1} parent=0
    _
  %s10 = ssub.s32 1, %s8
  %s11 = scalar_select 0, %s10, %s8
  $region1: #{tpu_custom_call.1} parent=0
    #allocation2 [shape = 'u8[4096]{0}', space=vmem, size = 0x1000, scoped, tag = 'input window, operand 0, single buffered']
    #allocation3 [shape = 's32[1]{0}', space=sflag, size = 0x4, scoped, tag = 'scoped memory for tpu_custom_call.1']
    #allocation4 [shape = 's32[1]{0}', space=sflag, size = 0x4, scoped, tag = 'scoped memory for tpu_custom_call.1']
    #allocation5 [shape = 'u8[16384]{0}', space=vmem, size = 0x4000, scoped, tag = 'input window, operand 1, single buffered']
    #allocation6 [shape = 's32[1]{0}', space=sflag, size = 0x4, scoped, tag = 'scoped memory for tpu_custom_call.1']
    #allocation7 [shape = 'u8[16384]{0}', space=vmem, size = 0x4000, scoped, tag = 'input window, operand 5, single buffered']
    #allocation8 [shape = 'u8[8192]{0}', space=vmem, size = 0x2000, scoped, tag = 'output window, operand 0, single buffered']
    %12 = vsyncpa [#allocation3], 0
    %13 = vsyncpa [#allocation6], 0
    %14 = vsyncpa [#allocation4], 0
    // Predicated region
    $region2: #{tpu_custom_call.1} parent=1 // pred_check
      _
    $region3: #{tpu_custom_call.1} parent=1 // pred_check_branch
      %16 = sbr.rel (0) target = $region5
    $region4: #{tpu_custom_call.1} parent=1 // pred_region
      %s18 = ssub.s32 128, 128
      %19 = vsyncadd [#allocation3], %s18
      %s20 = sshll.u32 [#allocation2], 4
      %s21 = int_to_ptr.vmem [resolvable:$true] %s20
      %26 = dma.hbm_to_vmem [thread:$0]  %s0, 128, %s21, [#allocation3], 64, 64, 4
    $region5: #{tpu_custom_call.1} parent=1 // pred_fallthru
      _
    // Predicated region
    $region6: #{tpu_custom_call.1} parent=1 // pred_check
      _
    $region7: #{tpu_custom_call.1} parent=1 // pred_check_branch
      %28 = sbr.rel (0) target = $region9
    $region8: #{tpu_custom_call.1} parent=1 // pred_region
      %s30 = ssub.s32 512, 512
      %31 = vsyncadd [#allocation6], %s30
      %s32 = sshll.u32 [#allocation5], 4
      %s33 = int_to_ptr.vmem [resolvable:$true] %s32
      %38 = dma.hbm_to_vmem [thread:$0]  %s1, 512, %s33, [#allocation6], 64, 64, 4
    $region9: #{tpu_custom_call.1} parent=1 // pred_fallthru
      _
    // Predicated region
    $region10: #{tpu_custom_call.1} parent=1 // pred_check
      _
    $region11: #{tpu_custom_call.1} parent=1 // pred_check_branch
      %40 = sbr.rel (0) target = $region13
    $region12: #{tpu_custom_call.1} parent=1 // pred_region
      _
    $region13: #{tpu_custom_call.1} parent=1 // pred_fallthru
      _
    // Predicated region
    $region14: #{tpu_custom_call.1} parent=1 // pred_check
      _
    $region15: #{tpu_custom_call.1} parent=1 // pred_check_branch
      %42 = sbr.rel (0) target = $region17
    $region16: #{tpu_custom_call.1} parent=1 // pred_region
      _
    $region17: #{tpu_custom_call.1} parent=1 // pred_fallthru
      _
    // Predicated region
    $region18: #{tpu_custom_call.1} parent=1 // pred_check
      _
    $region19: #{tpu_custom_call.1} parent=1 // pred_check_branch
      %44 = sbr.rel (0) target = $region21
    $region20: #{tpu_custom_call.1} parent=1 // pred_region
      _
    $region21: #{tpu_custom_call.1} parent=1 // pred_fallthru
      _
    // Predicated region
    $region22: #{tpu_custom_call.1} parent=1 // pred_check
      _
    $region23: #{tpu_custom_call.1} parent=1 // pred_check_branch
      %46 = sbr.rel (0) target = $region25
    $region24: #{tpu_custom_call.1} parent=1 // pred_region
      %s48 = ssub.s32 512, 512
      %49 = vsyncadd [#allocation6], %s48
      %s50 = sshll.u32 [#allocation7], 4
      %s51 = int_to_ptr.vmem [resolvable:$true] %s50
      %56 = dma.hbm_to_vmem [thread:$0]  %s5, 512, %s51, [#allocation6], 64, 64, 4
    $region25: #{tpu_custom_call.1} parent=1 // pred_fallthru
      _
    // Predicated region
    $region26: #{tpu_custom_call.1} parent=1 // pred_check
      _
    $region27: #{tpu_custom_call.1} parent=1 // pred_check_branch
      %58 = sbr.rel (0) target = $region29
    $region28: #{tpu_custom_call.1} parent=1 // pred_region
      _
    $region29: #{tpu_custom_call.1} parent=1 // pred_fallthru
      _
    // Predicated region
    $region30: #{tpu_custom_call.1} parent=1 // pred_check
      _
    $region31: #{tpu_custom_call.1} parent=1 // pred_check_branch
      %60 = sbr.rel (0) target = $region33
    $region32: #{tpu_custom_call.1} parent=1 // pred_region
      %61 = dma.done [#allocation3], 128
    $region33: #{tpu_custom_call.1} parent=1 // pred_fallthru
      _
    // Predicated region
    $region34: #{tpu_custom_call.1} parent=1 // pred_check
      _
    $region35: #{tpu_custom_call.1} parent=1 // pred_check_branch
      %63 = sbr.rel (0) target = $region37
    $region36: #{tpu_custom_call.1} parent=1 // pred_region
      %64 = dma.done [#allocation6], 512
    $region37: #{tpu_custom_call.1} parent=1 // pred_fallthru
      _
    // Predicated region
    $region38: #{tpu_custom_call.1} parent=1 // pred_check
      _
    $region39: #{tpu_custom_call.1} parent=1 // pred_check_branch
      %66 = sbr.rel (0) target = $region41
    $region40: #{tpu_custom_call.1} parent=1 // pred_region
      %67 = dma.done [#allocation6], 512
    $region41: #{tpu_custom_call.1} parent=1 // pred_fallthru
      _
    %v69 = vld [vmem:[#allocation2] sm:$0xf]
    %v70 = vld [vmem:[#allocation2 + $0x4] sm:$0xf]
    %v71 = vld [vmem:[#allocation5] sm:$0xf]
    %v72 = vld [vmem:[#allocation5 + $0x4] sm:$0xf]
    %v73 = vld [vmem:[#allocation5 + $0x8] sm:$0xf]
    %v74 = vld [vmem:[#allocation5 + $0xc] sm:$0xf]
    %v75 = vld [vmem:[#allocation5 + $0x10] sm:$0xf]
    %v76 = vld [vmem:[#allocation5 + $0x14] sm:$0xf]
    %v77 = vld [vmem:[#allocation5 + $0x18] sm:$0xf]
    %v78 = vld [vmem:[#allocation5 + $0x1c] sm:$0xf]
    %v79 = vld [vmem:[%s2] sm:$0x1]
    %v81 = vlaneseq
    %v82 = vshrl.u32 %v81, 7
    %v83 = vsub.s32 0, %v82
    %v84 = vrot.slane %v79, %v83
    %v88 = vunpack.c.l.b16 %v69
    %v89 = vunpack.c.l.b16 %v70
    %v90 = vpack.c.b16 %v89, %v88
    %v99 = vunpack.c.l.b16 %v71
    %v100 = vunpack.c.l.b16 %v72
    %v101 = vunpack.c.l.b16 %v73
    %v102 = vunpack.c.l.b16 %v74
    %v103 = vunpack.c.l.b16 %v75
    %v104 = vunpack.c.l.b16 %v76
    %v105 = vunpack.c.l.b16 %v77
    %v106 = vunpack.c.l.b16 %v78
    %v107 = vpack.c.b16 %v100, %v99
    %v108 = vpack.c.b16 %v102, %v101
    %v109 = vpack.c.b16 %v104, %v103
    %v110 = vpack.c.b16 %v106, %v105
    %vm115 = vcmask 523264
    %v117 = vsel %vm115, %v90, 0
    %119 = vmatprep.subr.bf16.mxu0 0
    %120 = vmatpush1.bf16.msra.mxu0 %v107
    %121 = vmatprep.subr.bf16.mxu0 0
    %122 = vmatpush1.bf16.msra.mxu0 %v108
    %123 = vmatprep.subr.bf16.mxu0 0
    %124 = vmatpush1.bf16.msra.mxu0 %v109
    %125 = vmatprep.subr.bf16.mxu0 0
    %126 = vmatpush1.bf16.msra.mxu0 %v110
    %127 = vmatprep.subr.bf16.mxu0 0
    %128 = vmatpush1.bf16.msra.mxu0 0
    %129 = vmatprep.subr.bf16.mxu0 0
    %130 = vmatpush1.bf16.msra.mxu0 0
    %131 = vmatprep.subr.bf16.mxu0 0
    %132 = vmatpush1.bf16.msra.mxu0 0
    %133 = vmatprep.subr.bf16.mxu0 0
    %134 = vmatpush1.bf16.msra.mxu0 0
    %135 = vmatprep.subr.bf16.mxu0 0
    %136 = vmatpush1.bf16.msra.mxu0 0
    %137 = vmatprep.subr.bf16.mxu0 0
    %138 = vmatpush1.bf16.msra.mxu0 0
    %139 = vmatprep.subr.bf16.mxu0 0
    %140 = vmatpush1.bf16.msra.mxu0 0
    %141 = vmatprep.subr.bf16.mxu0 0
    %142 = vmatpush1.bf16.msra.mxu0 0
    %143 = vmatprep.subr.bf16.mxu0 0
    %144 = vmatpush1.bf16.msra.mxu0 0
    %145 = vmatprep.subr.bf16.mxu0 0
    %146 = vmatpush1.bf16.msra.mxu0 0
    %147 = vmatprep.subr.bf16.mxu0 0
    %148 = vmatpush1.bf16.msra.mxu0 0
    %149 = vmatprep.subr.bf16.mxu0 0
    %150 = vmatpush1.bf16.msra.mxu0 0
    %151 = vmatprep.mubr.bf16.mxu0 0
    %152 = vmatmul.mubr.bf16.gmra.mrb[0].mxu0 %v117
    %v153 = vpop.f32.mrb[0].mxu0
    %v154 = vadd.f32 %v84, %v153
    %v155 = vpop.f32.mrb[0].mxu0
    %v156 = vpop.f32.mrb[0].mxu0
    %v157 = vadd.f32 %v84, %v156
    %v158 = vpop.f32.mrb[0].mxu0
    %159 = vdwg.mxu0
    %v160 = vmul.f32 %v154, 0.5
    %v161 = vmul.f32 %v157, 0.5
    %v162 = vmul.f32 %v154, 0.70710677
    %v163 = vmul.f32 %v157, 0.70710677
    %v164 = verf.f32.pop %v162
    %v165 = verf.f32.pop %v163
    %v166 = vadd.f32 %v164, 1.0
    %v167 = vadd.f32 %v165, 1.0
    %v168 = vmul.f32 %v160, %v166
    %v169 = vmul.f32 %v161, %v167
    %v170 = vsel %vm115, %v168, 0.0
    %171 = vadd.xlane.f32.xlu0 %v170
    %v172 = vpop.xlane.xlu0 %171
    %v173 = vsel %vm115, %v169, 0.0
    %174 = vadd.xlane.f32.xlu0 %v173
    %v175 = vpop.xlane.xlu0 %174
    %v176 = vrcp.pop 64.0
    %v177 = vmul.f32 %v172, %v176
    %v178 = vmul.f32 %v175, %v176
    %v179 = vsub.f32 %v168, %v177
    %v180 = vsub.f32 %v169, %v178
    %v181 = vmul.f32 %v179, %v179
    %v182 = vmul.f32 %v180, %v180
    %v183 = vsel %vm115, %v181, 0.0
    %184 = vadd.xlane.f32.xlu0 %v183
    %v185 = vpop.xlane.xlu0 %184
    %v186 = vsel %vm115, %v182, 0.0
    %187 = vadd.xlane.f32.xlu0 %v186
    %v188 = vpop.xlane.xlu0 %187
    %v189 = vmul.f32 %v185, %v176
    %v190 = vmul.f32 %v188, %v176
    %v191 = vadd.f32 %v189, 1e-05
    %v192 = vadd.f32 %v190, 1e-05
    %v193 = vrsqrt.pop %v191
    %v194 = vrsqrt.pop %v192
    %v195 = vmul.f32 %v179, %v193
    %v196 = vmul.f32 %v180, %v194
    %v197 = vld [vmem:[%s3] sm:$0x1]
    %v199 = vlaneseq
    %v200 = vshrl.u32 %v199, 7
    %v201 = vsub.s32 0, %v200
    %v202 = vrot.slane %v197, %v201
    %v204 = vmul.f32 %v195, %v202
    %v205 = vmul.f32 %v196, %v202
    %v206 = vld [vmem:[%s4] sm:$0x1]
    %v208 = vlaneseq
    %v209 = vshrl.u32 %v208, 7
    %v210 = vsub.s32 0, %v209
    %v211 = vrot.slane %v206, %v210
    %v213 = vadd.f32 %v204, %v211
    %v214 = vadd.f32 %v205, %v211
    %v215 = vpack.c.bf16 %v214, %v213
    %v216 = vld [vmem:[#allocation7] sm:$0xf]
    %v217 = vld [vmem:[#allocation7 + $0x4] sm:$0xf]
    %v218 = vld [vmem:[#allocation7 + $0x8] sm:$0xf]
    %v219 = vld [vmem:[#allocation7 + $0xc] sm:$0xf]
    %v220 = vld [vmem:[#allocation7 + $0x10] sm:$0xf]
    %v221 = vld [vmem:[#allocation7 + $0x14] sm:$0xf]
    %v222 = vld [vmem:[#allocation7 + $0x18] sm:$0xf]
    %v223 = vld [vmem:[#allocation7 + $0x1c] sm:$0xf]
    %v224 = vld [vmem:[%s6] sm:$0x1]
    %v226 = vlaneseq
    %v227 = vshrl.u32 %v226, 7
    %v228 = vsub.s32 0, %v227
    %v229 = vrot.slane %v224, %v228
    %v239 = vunpack.c.l.b16 %v216
    %v240 = vunpack.c.l.b16 %v217
    %v241 = vunpack.c.l.b16 %v218
    %v242 = vunpack.c.l.b16 %v219
    %v243 = vunpack.c.l.b16 %v220
    %v244 = vunpack.c.l.b16 %v221
    %v245 = vunpack.c.l.b16 %v222
    %v246 = vunpack.c.l.b16 %v223
    %v247 = vpack.c.b16 %v240, %v239
    %v248 = vpack.c.b16 %v242, %v241
    %v249 = vpack.c.b16 %v244, %v243
    %v250 = vpack.c.b16 %v246, %v245
    %v256 = vsel %vm115, %v215, 0
    %258 = vmatprep.subr.bf16.mxu0 0
    %259 = vmatpush1.bf16.msra.mxu0 %v247
    %260 = vmatprep.subr.bf16.mxu0 0
    %261 = vmatpush1.bf16.msra.mxu0 %v248
    %262 = vmatprep.subr.bf16.mxu0 0
    %263 = vmatpush1.bf16.msra.mxu0 %v249
    %264 = vmatprep.subr.bf16.mxu0 0
    %265 = vmatpush1.bf16.msra.mxu0 %v250
    %266 = vmatprep.subr.bf16.mxu0 0
    %267 = vmatpush1.bf16.msra.mxu0 0
    %268 = vmatprep.subr.bf16.mxu0 0
    %269 = vmatpush1.bf16.msra.mxu0 0
    %270 = vmatprep.subr.bf16.mxu0 0
    %271 = vmatpush1.bf16.msra.mxu0 0
    %272 = vmatprep.subr.bf16.mxu0 0
    %273 = vmatpush1.bf16.msra.mxu0 0
    %274 = vmatprep.subr.bf16.mxu0 0
    %275 = vmatpush1.bf16.msra.mxu0 0
    %276 = vmatprep.subr.bf16.mxu0 0
    %277 = vmatpush1.bf16.msra.mxu0 0
    %278 = vmatprep.subr.bf16.mxu0 0
    %279 = vmatpush1.bf16.msra.mxu0 0
    %280 = vmatprep.subr.bf16.mxu0 0
    %281 = vmatpush1.bf16.msra.mxu0 0
    %282 = vmatprep.subr.bf16.mxu0 0
    %283 = vmatpush1.bf16.msra.mxu0 0
    %284 = vmatprep.subr.bf16.mxu0 0
    %285 = vmatpush1.bf16.msra.mxu0 0
    %286 = vmatprep.subr.bf16.mxu0 0
    %287 = vmatpush1.bf16.msra.mxu0 0
    %288 = vmatprep.subr.bf16.mxu0 0
    %289 = vmatpush1.bf16.msra.mxu0 0
    %290 = vmatprep.mubr.bf16.mxu0 0
    %291 = vmatmul.mubr.bf16.gmra.mrb[0].mxu0 %v256
    %v292 = vpop.f32.mrb[0].mxu0
    %v293 = vadd.f32 %v229, %v292
    %v294 = vpop.f32.mrb[0].mxu0
    %v295 = vpop.f32.mrb[0].mxu0
    %v296 = vadd.f32 %v229, %v295
    %v297 = vpop.f32.mrb[0].mxu0
    %298 = vdwg.mxu0
    %299 = vst [vmem:[#allocation8] sm:$0xff] %v293
    %300 = vst [vmem:[#allocation8 + $0x8] sm:$0xff] %v296
    // Predicated region
    $region42: #{tpu_custom_call.1} parent=1 // pred_check
      _
    $region43: #{tpu_custom_call.1} parent=1 // pred_check_branch
      %302 = sbr.rel (0) target = $region45
    $region44: #{tpu_custom_call.1} parent=1 // pred_region
      %s304 = ssub.s32 256, 256
      %305 = vsyncadd [#allocation4], %s304
      %s306 = sshll.u32 [#allocation8], 4
      %s307 = int_to_ptr.vmem [resolvable:$true] %s306
      %312 = dma.vmem_to_hbm [thread:$0]  %s307, 256, %s7, [#allocation4], 128, 128, 8
    $region45: #{tpu_custom_call.1} parent=1 // pred_fallthru
      _
    // Predicated region
    $region46: #{tpu_custom_call.1} parent=1 // pred_check
      _
    $region47: #{tpu_custom_call.1} parent=1 // pred_check_branch
      %314 = sbr.rel (0) target = $region49
    $region48: #{tpu_custom_call.1} parent=1 // pred_region
      %315 = dma.done [#allocation4], 256
    $region49: #{tpu_custom_call.1} parent=1 // pred_fallthru
      _
    %316 = vsyncpa [#allocation3], 1
    %317 = vsyncpa [#allocation6], 1
    %318 = vsyncpa [#allocation4], 1

</llo_original>
